<compile_context>
chip_gen: v6e
topology: v6e:2x2x1
jax: 0.10.0
libtpu: 0.0.40
codegen_flags: <defaults>
</compile_context>

<pallas_src>
import jax
import jax.numpy as jnp
from jax.experimental import pallas as pl
from jax.experimental.pallas import tpu as pltpu


def _make_linear_softmax_kernel(pack: int, n_out: int):
    """Build the kernel for a given (static) packing factor and class count.

    Refs seen by the kernel:
      x_ref: (R, pack*D)      lane-packed rows (pack samples per row)
      w_ref: (pack*D, pack*N) block-diagonal copies of W^T  (VMEM resident)
      b_ref: (1, pack*N)      tiled bias                    (VMEM resident)
      o_ref: (R, pack*N)      per-sample softmax probabilities
    """

    def kernel(x_ref, w_ref, b_ref, o_ref):
        x = x_ref[...]
        w = w_ref[...]
        b = b_ref[...]
        # Linear layer: full-width MXU contraction (K = pack*D = 128 when packed).
        logits = jnp.dot(x, w, preferred_element_type=jnp.float32) + b
        # Numerically stable softmax, independently per packed sample group.
        groups = []
        for g in range(pack):
            z = logits[:, g * n_out:(g + 1) * n_out]
            m = jnp.max(z, axis=1, keepdims=True)
            e = jnp.exp(z - m)
            s = jnp.sum(e, axis=1, keepdims=True)
            groups.append(e / s)  # exact division: rows sum to 1
        probs = groups[0] if pack == 1 else jnp.concatenate(groups, axis=1)
        o_ref[...] = probs.astype(o_ref.dtype)

    return kernel


def torch_model_forward(x, weight, bias, *, block_batch=8192, single_shot_batch=1024):
    """softmax(x @ weight.T + bias, axis=1) as a fused Pallas TPU kernel.

    x: (B, D), weight: (N, D) (PyTorch layout), bias: (N,).
    block_batch:       samples per grid step for the streaming path
                       (8192 default; v5e/v6e with 128 MiB VMEM can go 16384+).
    single_shot_batch: below this batch size a single gridless call is used.
    """
    B, D = x.shape
    N = weight.shape[0]
    out_dtype = x.dtype

    # Packing factor: fold P consecutive samples into one 128-lane row.
    P = 128 // D if (D < 128 and 128 % D == 0) else 1

    w_t = jnp.transpose(weight).astype(jnp.float32)  # (D, N), one-time, free
    if P > 1:
        # Block-diagonal (P*D, P*N): group g of a packed row sees its own W^T copy.
        w_p = jnp.kron(jnp.eye(P, dtype=jnp.float32), w_t)
        b_p = jnp.tile(bias.astype(jnp.float32), P).reshape(1, P * N)
    else:
        w_p = w_t
        b_p = bias.astype(jnp.float32).reshape(1, N)

    # Pad the batch to a multiple of P (padded rows are sliced off at the end).
    Bp = ((B + P - 1) // P) * P
    xf = x.astype(jnp.float32)
    if Bp != B:
        xf = jnp.pad(xf, ((0, Bp - B), (0, 0)))
    Rp = Bp // P
    xp = xf.reshape(Rp, P * D)  # row-major reshape: free, fully lane-dense rows

    kernel = _make_linear_softmax_kernel(P, N)
    out_packed = jax.ShapeDtypeStruct((Rp, P * N), jnp.float32)
    cost = pl.CostEstimate(
        flops=2 * B * D * N,
        transcendentals=B * N,
        bytes_accessed=4 * (B * D + B * N + D * N + N),
    )

    if B <= single_shot_batch:
        # Small batch: single gridless call, everything resident in VMEM.
        out_p = pl.pallas_call(
            kernel,
            out_shape=out_packed,
            in_specs=[pl.BlockSpec(memory_space=pltpu.MemorySpace.VMEM)] * 3,
            out_specs=pl.BlockSpec(memory_space=pltpu.MemorySpace.VMEM),
            cost_estimate=cost,
        )(xp, w_p, b_p)
    else:
        # Streaming path: tile the packed-row axis, keep weight/bias whole in VMEM.
        tb = max(8, (max(block_batch // P, 8) // 8) * 8)
        # Guarantee >= 2 balanced grid steps so both v7x TensorCores get work.
        half = ((-(-Rp // 2) + 7) // 8) * 8
        tb = min(tb, half)
        grid = (pl.cdiv(Rp, tb),)
        out_p = pl.pallas_call(
            kernel,
            out_shape=out_packed,
            grid=grid,
            in_specs=[
                pl.BlockSpec((tb, P * D), lambda i: (i, 0)),        # packed x rows
                pl.BlockSpec(memory_space=pltpu.MemorySpace.VMEM),   # resident W
                pl.BlockSpec(memory_space=pltpu.MemorySpace.VMEM),   # resident bias
            ],
            out_specs=pl.BlockSpec((tb, P * N), lambda i: (i, 0)),
            compiler_params=pltpu.CompilerParams(
                dimension_semantics=("parallel",),
                vmem_limit_bytes=48 * 1024 * 1024,
            ),
            cost_estimate=cost,
        )(xp, w_p, b_p)
        # TODO(synk): if profiling ever shows exposed DMA with these tile sizes,
        # add pipeline_mode=pl.Buffered(3) on the x BlockSpec (costs VMEM on v7x).

    out = out_p.reshape(Bp, N)
    if Bp != B:
        out = out[:B]
    return out.astype(out_dtype)


if __name__ == "__main__":
    key = jax.random.PRNGKey(0)
    k_w, k_b, k_x1, k_x2, k_x3 = jax.random.split(key, 5)

    input_size = 32
    num_classes = 5

    # Deterministic synthetic parameters matching nn.Linear(input_size, 5).
    weight = jax.random.normal(k_w, (num_classes, input_size), dtype=jnp.float32) * 0.1
    bias = jax.random.normal(k_b, (num_classes,), dtype=jnp.float32) * 0.1

    def reference(xx):
        return jax.nn.softmax(xx @ weight.T + bias, axis=1)

    # 1) Small batch -> gridless single-shot path.
    x1 = jax.random.normal(k_x1, (8, input_size), dtype=jnp.float32)
    y1 = torch_model_forward(x1, weight, bias)
    jax.block_until_ready(y1)
    assert y1.shape == (8, num_classes)
    assert jnp.allclose(y1, reference(x1), atol=2e-3), "single-shot path mismatch"
    row_sums = jnp.sum(y1, axis=1)
    assert jnp.allclose(row_sums, jnp.ones_like(row_sums), atol=1e-4)

    # 2) Batch not a multiple of the packing factor -> exercises pad/unpack.
    x2 = jax.random.normal(k_x2, (50, input_size), dtype=jnp.float32)
    y2 = torch_model_forward(x2, weight, bias)
    jax.block_until_ready(y2)
    assert y2.shape == (50, num_classes)
    assert jnp.allclose(y2, reference(x2), atol=2e-3), "ragged-batch path mismatch"

    # 3) Tiled path at toy size: thresholds shrunk so 128 samples -> 32 packed
    #    rows, 16-row tiles, a 2-step "parallel" grid (megacore-shaped work).
    x3 = jax.random.normal(k_x3, (128, input_size), dtype=jnp.float32)
    y3 = torch_model_forward(x3, weight, bias, block_batch=256, single_shot_batch=16)
    jax.block_until_ready(y3)
    assert y3.shape == (128, num_classes)
    assert jnp.allclose(y3, reference(x3), atol=2e-3), "tiled path mismatch"

    print("KERNEL_OK")
</pallas_src>

<mosaic_0001>
module attributes {stable_mosaic.version = 11 : i64} {
  func.func @kernel(%arg0: memref<2x128xf32, #tpu.memory_space<vmem>>, %arg1: memref<128x20xf32, #tpu.memory_space<vmem>>, %arg2: memref<1x20xf32, #tpu.memory_space<vmem>>, %arg3: memref<2x20xf32, #tpu.memory_space<vmem>>) attributes {dimension_semantics = [], scalar_prefetch = 0 : i64, scratch_operands = 0 : i64, tpu.core_type = #tpu.core_type<tc>} {
    %c0 = arith.constant 0 : index
    %c0_0 = arith.constant 0 : index
    %0 = vector.load %arg0[%c0, %c0_0] : memref<2x128xf32, #tpu.memory_space<vmem>>, vector<2x128xf32>
    %c0_1 = arith.constant 0 : index
    %c0_2 = arith.constant 0 : index
    %1 = vector.load %arg1[%c0_1, %c0_2] : memref<128x20xf32, #tpu.memory_space<vmem>>, vector<128x20xf32>
    %c0_3 = arith.constant 0 : index
    %c0_4 = arith.constant 0 : index
    %2 = vector.load %arg2[%c0_3, %c0_4] : memref<1x20xf32, #tpu.memory_space<vmem>>, vector<1x20xf32>
    %cst = arith.constant dense<0.000000e+00> : vector<2x20xf32>
    %3 = tpu.matmul %0, %1, %cst {dimension_numbers = #tpu.dot_dimension_numbers<[1], [0], [0], [1], [0, 0, 1, 1], [], []>} : vector<2x128xf32>, vector<128x20xf32>, vector<2x20xf32> -> vector<2x20xf32>
    %4 = vector.broadcast %2 : vector<1x20xf32> to vector<2x20xf32>
    %5 = arith.addf %3, %4 : vector<2x20xf32>
    %6 = vector.extract_strided_slice %5 {offsets = [0, 0], sizes = [2, 5], strides = [1, 1]} : vector<2x20xf32> to vector<2x5xf32>
    %cst_5 = arith.constant dense<0xFF800000> : vector<2xf32>
    %7 = vector.multi_reduction <maximumf>, %6, %cst_5 [1] : vector<2x5xf32> to vector<2xf32>
    %8 = vector.shape_cast %7 : vector<2xf32> to vector<2x1xf32>
    %9 = vector.broadcast %8 : vector<2x1xf32> to vector<2x5xf32>
    %10 = arith.subf %6, %9 : vector<2x5xf32>
    %11 = math.exp %10 : vector<2x5xf32>
    %cst_6 = arith.constant dense<0.000000e+00> : vector<2xf32>
    %12 = vector.multi_reduction <add>, %11, %cst_6 [1] : vector<2x5xf32> to vector<2xf32>
    %13 = vector.shape_cast %12 : vector<2xf32> to vector<2x1xf32>
    %14 = vector.broadcast %13 : vector<2x1xf32> to vector<2x5xf32>
    %15 = arith.divf %11, %14 : vector<2x5xf32>
    %16 = vector.extract_strided_slice %5 {offsets = [0, 5], sizes = [2, 5], strides = [1, 1]} : vector<2x20xf32> to vector<2x5xf32>
    %cst_7 = arith.constant dense<0xFF800000> : vector<2xf32>
    %17 = vector.multi_reduction <maximumf>, %16, %cst_7 [1] : vector<2x5xf32> to vector<2xf32>
    %18 = vector.shape_cast %17 : vector<2xf32> to vector<2x1xf32>
    %19 = vector.broadcast %18 : vector<2x1xf32> to vector<2x5xf32>
    %20 = arith.subf %16, %19 : vector<2x5xf32>
    %21 = math.exp %20 : vector<2x5xf32>
    %cst_8 = arith.constant dense<0.000000e+00> : vector<2xf32>
    %22 = vector.multi_reduction <add>, %21, %cst_8 [1] : vector<2x5xf32> to vector<2xf32>
    %23 = vector.shape_cast %22 : vector<2xf32> to vector<2x1xf32>
    %24 = vector.broadcast %23 : vector<2x1xf32> to vector<2x5xf32>
    %25 = arith.divf %21, %24 : vector<2x5xf32>
    %26 = vector.extract_strided_slice %5 {offsets = [0, 10], sizes = [2, 5], strides = [1, 1]} : vector<2x20xf32> to vector<2x5xf32>
    %cst_9 = arith.constant dense<0xFF800000> : vector<2xf32>
    %27 = vector.multi_reduction <maximumf>, %26, %cst_9 [1] : vector<2x5xf32> to vector<2xf32>
    %28 = vector.shape_cast %27 : vector<2xf32> to vector<2x1xf32>
    %29 = vector.broadcast %28 : vector<2x1xf32> to vector<2x5xf32>
    %30 = arith.subf %26, %29 : vector<2x5xf32>
    %31 = math.exp %30 : vector<2x5xf32>
    %cst_10 = arith.constant dense<0.000000e+00> : vector<2xf32>
    %32 = vector.multi_reduction <add>, %31, %cst_10 [1] : vector<2x5xf32> to vector<2xf32>
    %33 = vector.shape_cast %32 : vector<2xf32> to vector<2x1xf32>
    %34 = vector.broadcast %33 : vector<2x1xf32> to vector<2x5xf32>
    %35 = arith.divf %31, %34 : vector<2x5xf32>
    %36 = vector.extract_strided_slice %5 {offsets = [0, 15], sizes = [2, 5], strides = [1, 1]} : vector<2x20xf32> to vector<2x5xf32>
    %cst_11 = arith.constant dense<0xFF800000> : vector<2xf32>
    %37 = vector.multi_reduction <maximumf>, %36, %cst_11 [1] : vector<2x5xf32> to vector<2xf32>
    %38 = vector.shape_cast %37 : vector<2xf32> to vector<2x1xf32>
    %39 = vector.broadcast %38 : vector<2x1xf32> to vector<2x5xf32>
    %40 = arith.subf %36, %39 : vector<2x5xf32>
    %41 = math.exp %40 : vector<2x5xf32>
    %cst_12 = arith.constant dense<0.000000e+00> : vector<2xf32>
    %42 = vector.multi_reduction <add>, %41, %cst_12 [1] : vector<2x5xf32> to vector<2xf32>
    %43 = vector.shape_cast %42 : vector<2xf32> to vector<2x1xf32>
    %44 = vector.broadcast %43 : vector<2x1xf32> to vector<2x5xf32>
    %45 = arith.divf %41, %44 : vector<2x5xf32>
    %46 = tpu.concatenate %15, %25, %35, %45 in 1 : vector<2x5xf32>, vector<2x5xf32>, vector<2x5xf32>, vector<2x5xf32> -> vector<2x20xf32>
    %c0_13 = arith.constant 0 : index
    %c0_14 = arith.constant 0 : index
    %47 = vector.load %arg3[%c0_13, %c0_14] : memref<2x20xf32, #tpu.memory_space<vmem>>, vector<2x20xf32>
    tpu.vector_store %arg3[%c0_13, %c0_14], %46 {strides = array<i32>} : memref<2x20xf32, #tpu.memory_space<vmem>>, vector<2x20xf32>,
    return
  }
}

</mosaic_0001>

<llo_original>
// kernel: tpu_custom_call.1
$region0: #{tpu_custom_call.1}
  #allocation0 [shape = 'u32[]', space=smem, size = 0x4, offset = 0x4, fixed_abs, tag = 'smem constant byte address 0x4 - core index']
  #allocation1 [shape = 'u32[144,128]{1,0:T(1,128)}', space=vmem, size = 0x12000, scoped, tag = 'internal scratch']
  %s0 = inlined_call_operand.vmem [shape: f32[2,128], index: 0, kind: input, shape index: {}]
  %s1 = inlined_call_operand.vmem [shape: f32[128,20], index: 1, kind: input, shape index: {}]
  %s2 = inlined_call_operand.vmem [shape: f32[1,20], index: 2, kind: input, shape index: {}]
  %s3 = inlined_call_operand.hbm [shape: f32[2,20], index: 3, kind: output, shape index: {}]
  %s4 = sld [smem:[#allocation0]]
  $region22: #{tpu_custom_call.1} parent=0
    _
  %s6 = ssub.s32 1, %s4
  %s7 = scalar_select 0, %s6, %s4
  $region1: #{tpu_custom_call.1} parent=0
    #allocation2 [shape = 'u8[1024]{0}', space=vmem, size = 0x400, scoped, tag = 'output window, operand 0, single buffered']
    #allocation3 [shape = 's32[1]{0}', space=sflag, size = 0x4, scoped, tag = 'scoped memory for tpu_custom_call.1']
    %8 = vsyncpa [#allocation3], 0
    // Predicated region
    $region2: #{tpu_custom_call.1} parent=1 // pred_check
      _
    $region3: #{tpu_custom_call.1} parent=1 // pred_check_branch
      %10 = sbr.rel (0) target = $region5
    $region4: #{tpu_custom_call.1} parent=1 // pred_region
      _
    $region5: #{tpu_custom_call.1} parent=1 // pred_fallthru
      _
    // Predicated region
    $region6: #{tpu_custom_call.1} parent=1 // pred_check
      _
    $region7: #{tpu_custom_call.1} parent=1 // pred_check_branch
      %12 = sbr.rel (0) target = $region9
    $region8: #{tpu_custom_call.1} parent=1 // pred_region
      _
    $region9: #{tpu_custom_call.1} parent=1 // pred_fallthru
      _
    // Predicated region
    $region10: #{tpu_custom_call.1} parent=1 // pred_check
      _
    $region11: #{tpu_custom_call.1} parent=1 // pred_check_branch
      %14 = sbr.rel (0) target = $region13
    $region12: #{tpu_custom_call.1} parent=1 // pred_region
      _
    $region13: #{tpu_custom_call.1} parent=1 // pred_fallthru
      _
    %v15 = vld [vmem:[%s0] sm:$0x3]
    %v16 = vld [vmem:[%s1] sm:$0xff]
    %v17 = vld [vmem:[%s1 + $0x8] sm:$0xff]
    %v18 = vld [vmem:[%s1 + $0x10] sm:$0xff]
    %v19 = vld [vmem:[%s1 + $0x18] sm:$0xff]
    %v20 = vld [vmem:[%s1 + $0x20] sm:$0xff]
    %v21 = vld [vmem:[%s1 + $0x28] sm:$0xff]
    %v22 = vld [vmem:[%s1 + $0x30] sm:$0xff]
    %v23 = vld [vmem:[%s1 + $0x38] sm:$0xff]
    %v24 = vld [vmem:[%s1 + $0x40] sm:$0xff]
    %v25 = vld [vmem:[%s1 + $0x48] sm:$0xff]
    %v26 = vld [vmem:[%s1 + $0x50] sm:$0xff]
    %v27 = vld [vmem:[%s1 + $0x58] sm:$0xff]
    %v28 = vld [vmem:[%s1 + $0x60] sm:$0xff]
    %v29 = vld [vmem:[%s1 + $0x68] sm:$0xff]
    %v30 = vld [vmem:[%s1 + $0x70] sm:$0xff]
    %v31 = vld [vmem:[%s1 + $0x78] sm:$0xff]
    %v32 = vld [vmem:[%s2] sm:$0x1]
    %v34 = vlaneseq
    %v35 = vshrl.u32 %v34, 7
    %v36 = vsub.s32 0, %v35
    %v37 = vrot.slane %v32, %v36
    %39 = vmatprep.subr.mxu0 0.0
    %40 = vmatpush1.msra.mxu0 %v31
    %41 = vmatprep.subr.mxu0 0.0
    %42 = vmatpush1.msra.mxu0 %v30
    %43 = vmatprep.subr.mxu0 0.0
    %44 = vmatpush1.msra.mxu0 %v29
    %45 = vmatprep.subr.mxu0 0.0
    %46 = vmatpush1.msra.mxu0 %v28
    %47 = vmatprep.subr.mxu0 0.0
    %48 = vmatpush1.msra.mxu0 %v27
    %49 = vmatprep.subr.mxu0 0.0
    %50 = vmatpush1.msra.mxu0 %v26
    %51 = vmatprep.subr.mxu0 0.0
    %52 = vmatpush1.msra.mxu0 %v25
    %53 = vmatprep.subr.mxu0 0.0
    %54 = vmatpush1.msra.mxu0 %v24
    %55 = vmatprep.subr.mxu0 0.0
    %56 = vmatpush1.msra.mxu0 %v23
    %57 = vmatprep.subr.mxu0 0.0
    %58 = vmatpush1.msra.mxu0 %v22
    %59 = vmatprep.subr.mxu0 0.0
    %60 = vmatpush1.msra.mxu0 %v21
    %61 = vmatprep.subr.mxu0 0.0
    %62 = vmatpush1.msra.mxu0 %v20
    %63 = vmatprep.subr.mxu0 0.0
    %64 = vmatpush1.msra.mxu0 %v19
    %65 = vmatprep.subr.mxu0 0.0
    %66 = vmatpush1.msra.mxu0 %v18
    %67 = vmatprep.subr.mxu0 0.0
    %68 = vmatpush1.msra.mxu0 %v17
    %69 = vmatprep.subr.mxu0 0.0
    %70 = vmatpush1.msra.mxu0 %v16
    %71 = vmatprep.subr.mxu0 0.0
    %72 = vmatpush2.msra.mxu0 0.0
    %73 = vmatprep.subr.mxu0 0.0
    %74 = vmatpush2.msra.mxu0 0.0
    %75 = vmatprep.subr.mxu0 0.0
    %76 = vmatpush2.msra.mxu0 0.0
    %77 = vmatprep.subr.mxu0 0.0
    %78 = vmatpush2.msra.mxu0 0.0
    %79 = vmatprep.subr.mxu0 0.0
    %80 = vmatpush2.msra.mxu0 0.0
    %81 = vmatprep.subr.mxu0 0.0
    %82 = vmatpush2.msra.mxu0 0.0
    %83 = vmatprep.subr.mxu0 0.0
    %84 = vmatpush2.msra.mxu0 0.0
    %85 = vmatprep.subr.mxu0 0.0
    %86 = vmatpush2.msra.mxu0 0.0
    %87 = vmatprep.subr.mxu0 0.0
    %88 = vmatpush2.msra.mxu0 0.0
    %89 = vmatprep.subr.mxu0 0.0
    %90 = vmatpush2.msra.mxu0 0.0
    %91 = vmatprep.subr.mxu0 0.0
    %92 = vmatpush2.msra.mxu0 0.0
    %93 = vmatprep.subr.mxu0 0.0
    %94 = vmatpush2.msra.mxu0 0.0
    %95 = vmatprep.subr.mxu0 0.0
    %96 = vmatpush2.msra.mxu0 0.0
    %97 = vmatprep.subr.mxu0 0.0
    %98 = vmatpush2.msra.mxu0 0.0
    %99 = vmatprep.subr.mxu0 0.0
    %100 = vmatpush2.msra.mxu0 0.0
    %101 = vmatprep.subr.mxu0 0.0
    %102 = vmatpush2.msra.mxu0 0.0
    %103 = vmatprep.mubr.f32.mxu0 0.0
    %104 = vmatmul.mubr.f32.gmra.mxu0 %v15
    %v105 = vpop.f32.mrf.mxu0
    %v106 = vadd.f32 %v37, %v105
    %v107 = vpop.f32.mrf.mxu0
    %108 = vdwg.mxu0
    %vm109 = vcmask 33792
    %v110 = vsel %vm109, %v106, -inf
    %111 = vmax.xlane.f32.xlu0 %v110
    %v112 = vpop.xlane.xlu0 %111
    %v113 = vsub.f32 %v106, %v112
    %v114 = vmul.f32 %v113, 1.442695
    %v115 = vpow.pop %v114
    %v116 = vsel %vm109, %v115, 0.0
    %117 = vadd.xlane.f32.xlu0 %v116
    %v118 = vpop.xlane.xlu0 %117
    %v119 = vrcp.pop %v118
    %v120 = vmul.f32 %v115, %v119
    %vm121 = vcmask 74792
    %v122 = vsel %vm121, %v106, -inf
    %123 = vmax.xlane.f32.xlu0 %v122
    %v124 = vpop.xlane.xlu0 %123
    %v125 = vsub.f32 %v106, %v124
    %v126 = vmul.f32 %v125, 1.442695
    %v127 = vpow.pop %v126
    %129 = vrot.lane.b32.xlu0 %v127, 123
    %v130 = vpop.permute.xlu0 %129
    %v132 = vsel %vm109, %v130, 0.0
    %133 = vadd.xlane.f32.xlu0 %v132
    %v134 = vpop.xlane.xlu0 %133
    %v135 = vrcp.pop %v134
    %v136 = vmul.f32 %v127, %v135
    %vm137 = vcmask 115792
    %v138 = vsel %vm137, %v106, -inf
    %139 = vmax.xlane.f32.xlu0 %v138
    %v140 = vpop.xlane.xlu0 %139
    %v141 = vsub.f32 %v106, %v140
    %v142 = vmul.f32 %v141, 1.442695
    %v143 = vpow.pop %v142
    %145 = vrot.lane.b32.xlu0 %v143, 118
    %v146 = vpop.permute.xlu0 %145
    %v148 = vsel %vm109, %v146, 0.0
    %149 = vadd.xlane.f32.xlu0 %v148
    %v150 = vpop.xlane.xlu0 %149
    %v151 = vrcp.pop %v150
    %v152 = vmul.f32 %v143, %v151
    %vm153 = vcmask 156792
    %v154 = vsel %vm153, %v106, -inf
    %155 = vmax.xlane.f32.xlu0 %v154
    %v156 = vpop.xlane.xlu0 %155
    %v157 = vsub.f32 %v106, %v156
    %v158 = vmul.f32 %v157, 1.442695
    %v159 = vpow.pop %v158
    %161 = vrot.lane.b32.xlu0 %v159, 113
    %v162 = vpop.permute.xlu0 %161
    %v164 = vsel %vm109, %v162, 0.0
    %165 = vadd.xlane.f32.xlu0 %v164
    %v166 = vpop.xlane.xlu0 %165
    %v167 = vrcp.pop %v166
    %v168 = vmul.f32 %v159, %v167
    %vm169 = vcmask 39936
    %v170 = vsel %vm169, %v120, %v136
    %vm171 = vcmask 80896
    %v172 = vsel %vm171, %v170, %v152
    %vm173 = vcmask 121856
    %v174 = vsel %vm173, %v172, %v168
    %vm175 = vcmask 156672
    %176 = vst.msk [vmem:[#allocation2] sm:$0x3] %vm175, %v174
    // Predicated region
    $region14: #{tpu_custom_call.1} parent=1 // pred_check
      _
    $region15: #{tpu_custom_call.1} parent=1 // pred_check_branch
      %178 = sbr.rel (0) target = $region17
    $region16: #{tpu_custom_call.1} parent=1 // pred_region
      %s180 = ssub.s32 32, 32
      %181 = vsyncadd [#allocation3], %s180
      %s183 = sshll.u32 [#allocation2], 4
      %s184 = int_to_ptr.vmem [resolvable:$true] %s183
      %186 = dma.vmem_to_hbm [thread:$0]  %s184, 32, %s3, [#allocation3]
    $region17: #{tpu_custom_call.1} parent=1 // pred_fallthru
      _
    // Predicated region
    $region18: #{tpu_custom_call.1} parent=1 // pred_check
      _
    $region19: #{tpu_custom_call.1} parent=1 // pred_check_branch
      %188 = sbr.rel (0) target = $region21
    $region20: #{tpu_custom_call.1} parent=1 // pred_region
      %189 = dma.done [#allocation3], 32
    $region21: #{tpu_custom_call.1} parent=1 // pred_fallthru
      _
    %190 = vsyncpa [#allocation3], 1

</llo_original>
